<compile_context>
chip_gen: v7x
topology: tpu7x:2x2x1
jax: 0.10.0
libtpu: 0.0.40
codegen_flags: <defaults>
</compile_context>

<pallas_src>
import math
from functools import partial

import jax
import jax.numpy as jnp
from jax.experimental import pallas as pl
from jax.experimental.pallas import tpu as pltpu

_LANE = 1024                      # lane-dense last dim (multiple of 128)
_TARGET_BLOCK_BYTES = 2 * 1024 * 1024   # ~2 MiB per block


def _copy_kernel(x_ref, o_ref):
    # Whole-tile load + store; this is the entire forward pass.
    o_ref[...] = x_ref[...]


def _sublane_multiple(dtype) -> int:
    """Sublane tile multiple for packed dtypes (f32->8, bf16->16, i8/fp8->32)."""
    itemsize = jnp.dtype(dtype).itemsize
    return max(8, (8 * 4) // itemsize)


@jax.jit
def fast_style_transfer_forward(x: jax.Array) -> jax.Array:
    """Pallas equivalent of FastStyleTransferModel.forward (identity)."""
    orig_shape = x.shape
    dtype = x.dtype
    itemsize = jnp.dtype(dtype).itemsize
    total = math.prod(orig_shape)

    # --- lane-dense flatten: (rows, _LANE) ---------------------------------
    rows = -(-total // _LANE)
    sub_mult = _sublane_multiple(dtype)

    # Block rows: ~2 MiB per block, rounded to the sublane packing multiple,
    # but never larger than the (sublane-rounded) data itself.
    target_rows = max(sub_mult, _TARGET_BLOCK_BYTES // (_LANE * itemsize))
    target_rows = (target_rows // sub_mult) * sub_mult
    rows_rounded = -(-rows // sub_mult) * sub_mult
    tile_rows = min(target_rows, rows_rounded)

    rows_padded = -(-rows // tile_rows) * tile_rows
    padded_total = rows_padded * _LANE

    x_flat = x.reshape(-1)
    if padded_total != total:
        x_flat = jnp.pad(x_flat, (0, padded_total - total))
    x2d = x_flat.reshape(rows_padded, _LANE)

    grid = (rows_padded // tile_rows,)
    block = (tile_rows, _LANE)

    out2d = pl.pallas_call(
        _copy_kernel,
        out_shape=jax.ShapeDtypeStruct(x2d.shape, dtype),
        grid_spec=pltpu.PrefetchScalarGridSpec(
            num_scalar_prefetch=0,
            grid=grid,
            in_specs=[pl.BlockSpec(block, lambda i: (i, 0))],
            out_specs=pl.BlockSpec(block, lambda i: (i, 0)),
        ),
        compiler_params=pltpu.CompilerParams(
            dimension_semantics=("parallel",),       # 2 TCs on v7x
            vmem_limit_bytes=32 * 1024 * 1024,       # explicit; safe on v7x
        ),
        input_output_aliases={0: 0},                 # pure identity: reuse buffer
    )(x2d)

    out_flat = out2d.reshape(-1)
    if padded_total != total:
        out_flat = out_flat[:total]
    return out_flat.reshape(orig_shape)


if __name__ == "__main__":
    key = jax.random.PRNGKey(0)
    # Small NCHW input consistent with an image-style model input.
    x = jax.random.normal(key, (2, 4, 16, 16), dtype=jnp.float32)

    y = fast_style_transfer_forward(x)
    jax.block_until_ready(y)

    # Forward is identity: verify exact match.
    assert y.shape == x.shape and y.dtype == x.dtype
    assert bool(jnp.all(y == x))

    print("KERNEL_OK")
</pallas_src>

<mosaic_0001>
module attributes {stable_mosaic.version = 11 : i64} {
  func.func @_copy_kernel(%arg0: i32, %arg1: memref<8x1024xf32, #tpu.memory_space<vmem>>, %arg2: memref<8x1024xf32, #tpu.memory_space<vmem>>) attributes {dimension_semantics = [#tpu.dimension_semantics<parallel>], iteration_bounds = array<i64: 1>, scalar_prefetch = 0 : i64, scratch_operands = 0 : i64, tpu.core_type = #tpu.core_type<tc>, window_params = [{transform_indices = @transform_0, window_bounds = array<i64: 8, 1024>}, {transform_indices = @transform_1, window_bounds = array<i64: 8, 1024>}]} {
    %c0 = arith.constant 0 : index
    %c0_0 = arith.constant 0 : index
    %0 = vector.load %arg1[%c0, %c0_0] : memref<8x1024xf32, #tpu.memory_space<vmem>>, vector<8x1024xf32>
    %c0_1 = arith.constant 0 : index
    %c0_2 = arith.constant 0 : index
    %1 = vector.load %arg2[%c0_1, %c0_2] : memref<8x1024xf32, #tpu.memory_space<vmem>>, vector<8x1024xf32>
    tpu.vector_store %arg2[%c0_1, %c0_2], %0 {strides = array<i32>} : memref<8x1024xf32, #tpu.memory_space<vmem>>, vector<8x1024xf32>,
    return
  }
  func.func @transform_0(%arg0: i32) -> (i32, i32) {
    %c0_i32 = arith.constant 0 : i32
    %c0_i32_0 = arith.constant 0 : i32
    return %arg0, %c0_i32 : i32, i32
  }
  func.func @transform_1(%arg0: i32) -> (i32, i32) {
    %c0_i32 = arith.constant 0 : i32
    %c0_i32_0 = arith.constant 0 : i32
    return %arg0, %c0_i32 : i32, i32
  }
}

</mosaic_0001>

<llo_original>
// kernel: fast_style_transfer_forward.1
$region0: #{fast_style_transfer_forward.1}
  #allocation0 [shape = 'u32[]', space=smem, size = 0x4, offset = 0x4, fixed_abs, tag = 'smem constant byte address 0x4 - core index']
  #allocation1 [shape = 'u32[144,128]{1,0:T(1,128)}', space=vmem, size = 0x12000, scoped, tag = 'internal scratch']
  %s0 = inlined_call_operand.vmem [shape: f32[8,1024], index: 0, kind: input, shape index: {}, may-alias: {0,1}]
  %s1 = inlined_call_operand.vmem [shape: f32[8,1024], index: 1, kind: output, shape index: {}, may-alias: {0,1}]
  %s2 = sld [smem:[#allocation0]]
  $region14: #{fast_style_transfer_forward.1} parent=0
    _
  %s4 = ssub.s32 1, %s2
  %s5 = scalar_select 0, %s4, %s2
  // Predicated region
  $region2: #{fast_style_transfer_forward.1} parent=0 // pred_check
    _
  $region3: #{fast_style_transfer_forward.1} parent=0 // pred_check_branch
    %7 = sbr.rel (0) target = $region5
  $region4: #{fast_style_transfer_forward.1} parent=0 // pred_region
    _
  $region5: #{fast_style_transfer_forward.1} parent=0 // pred_fallthru
    _
  %v8 = vld [vmem:[%s0] sm:$0xff]
  %v9 = vld [vmem:[%s0 + $0x8] sm:$0xff]
  %v10 = vld [vmem:[%s0 + $0x10] sm:$0xff]
  %v11 = vld [vmem:[%s0 + $0x18] sm:$0xff]
  %v12 = vld [vmem:[%s0 + $0x20] sm:$0xff]
  %v13 = vld [vmem:[%s0 + $0x28] sm:$0xff]
  %v14 = vld [vmem:[%s0 + $0x30] sm:$0xff]
  %v15 = vld [vmem:[%s0 + $0x38] sm:$0xff]
  %16 = vst [vmem:[%s1] sm:$0xff] %v8
  %17 = vst [vmem:[%s1 + $0x8] sm:$0xff] %v9
  %18 = vst [vmem:[%s1 + $0x10] sm:$0xff] %v10
  %19 = vst [vmem:[%s1 + $0x18] sm:$0xff] %v11
  %20 = vst [vmem:[%s1 + $0x20] sm:$0xff] %v12
  %21 = vst [vmem:[%s1 + $0x28] sm:$0xff] %v13
  %22 = vst [vmem:[%s1 + $0x30] sm:$0xff] %v14
  %23 = vst [vmem:[%s1 + $0x38] sm:$0xff] %v15
  // Predicated region
  $region6: #{fast_style_transfer_forward.1} parent=0 // pred_check
    _
  $region7: #{fast_style_transfer_forward.1} parent=0 // pred_check_branch
    %25 = sbr.rel (0) target = $region9
  $region8: #{fast_style_transfer_forward.1} parent=0 // pred_region
    _
  $region9: #{fast_style_transfer_forward.1} parent=0 // pred_fallthru
    _
  // Predicated region
  $region10: #{fast_style_transfer_forward.1} parent=0 // pred_check
    _
  $region11: #{fast_style_transfer_forward.1} parent=0 // pred_check_branch
    %27 = sbr.rel (0) target = $region13
  $region12: #{fast_style_transfer_forward.1} parent=0 // pred_region
    _
  $region13: #{fast_style_transfer_forward.1} parent=0 // pred_fallthru
    _

</llo_original>
